<compile_context>
chip_gen: v7x
topology: tpu7x:2x2x1
jax: 0.10.0
libtpu: 0.0.40
codegen_flags: <defaults>
</compile_context>

<pallas_src>
import functools

import jax
import jax.numpy as jnp
import numpy as np
from jax.experimental import pallas as pl
from jax.experimental.pallas import tpu as pltpu

# Layer sizes of the original module (fc1..fc5): (in, out).
_DIMS = [(3, 64), (64, 128), (128, 64), (64, 32), (32, 1)]
# Static sublane offsets of each bias in the concatenated bias buffer.
_B_TOTAL = 296  # 64+128+64+32+1 = 289, rounded up to a multiple of 8 sublanes.


def _round_up(n, m):
    return ((n + m - 1) // m) * m


def mlp_kernel(xt_ref, w1_ref, w2_ref, w3_ref, w4_ref, w5t_ref, bias_ref, o_ref):
    """One batch tile of the fused MLP, batch in the lane dimension.

    xt_ref  : (3, TB)   f32   input features^T (streamed per grid step)
    w1_ref  : (64, 3)   f32   fc1 weight (out, in)   -> VPU outer-product FMAs
    w2_ref  : (128, 64) bf16  fc2 weight (out, in)   -> MXU
    w3_ref  : (64, 128) bf16  fc3 weight (out, in)   -> MXU
    w4_ref  : (32, 64)  bf16  fc4 weight (out, in)   -> MXU
    w5t_ref : (32, 1)   f32   fc5 weight^T           -> VPU mul + XLU reduce
    bias_ref: (296, 1)  f32   [b1|b2|b3|b4|b5] concatenated, sublane-aligned
    o_ref   : (1, TB)   f32   sigmoid output (lane-dense)
    """
    x = xt_ref[...]                                   # (3, TB) f32

    b1 = bias_ref[0:64, :]
    b2 = bias_ref[64:192, :]
    b3 = bias_ref[192:256, :]
    b4 = bias_ref[256:288, :]
    b5 = bias_ref[288:289, :]

    # fc1: K=3 contraction -> 3 broadcast multiply-adds on the VPU (an MXU pass
    # would be <3% utilized at this depth).
    w1 = w1_ref[...]                                  # (64, 3) f32
    h = (w1[:, 0:1] * x[0:1, :]
         + w1[:, 1:2] * x[1:2, :]
         + w1[:, 2:3] * x[2:3, :]
         + b1)
    h = jnp.maximum(h, 0.0)                           # (64, TB)
    # dropout(p=0.1): identity at inference (elided).

    # fc2..fc4: bf16 MXU matmuls with f32 accumulation; bias/ReLU stay in f32.
    h = jnp.maximum(
        jnp.dot(w2_ref[...], h.astype(jnp.bfloat16),
                preferred_element_type=jnp.float32) + b2, 0.0)        # (128, TB)
    h = jnp.maximum(
        jnp.dot(w3_ref[...], h.astype(jnp.bfloat16),
                preferred_element_type=jnp.float32) + b3, 0.0)        # (64, TB)
    h = jnp.maximum(
        jnp.dot(w4_ref[...], h.astype(jnp.bfloat16),
                preferred_element_type=jnp.float32) + b4, 0.0)        # (32, TB)

    # fc5: N=1 output -> elementwise multiply + sublane reduction (XLU) instead
    # of a 1-row MXU matmul.
    logit = jnp.sum(w5t_ref[...] * h, axis=0, keepdims=True) + b5     # (1, TB)

    # sigmoid: exp on the EUP + approximate reciprocal (also EUP slot).
    o_ref[...] = pl.reciprocal(1.0 + jnp.exp(-logit), approx=True).astype(o_ref.dtype)


@functools.partial(jax.jit, static_argnames=("block_b",))
def simple_classifier_forward(x, params, block_b=1024):
    """x: (B, 3) float32. params: list of (W, b) with torch layout W=(out, in).

    Returns (B, 1) float32 sigmoid probabilities.
    """
    B = x.shape[0]
    tb = min(block_b, _round_up(max(B, 1), 128))      # batch tile, multiple of 128
    b_pad = _round_up(B, tb)                          # pad tail tile (compute-only)
    n_tiles = b_pad // tb

    (w1, b1), (w2, b2), (w3, b3), (w4, b4), (w5, b5) = params

    # Batch-in-lanes: transpose features-major and zero-pad the batch to the tile.
    xt = jnp.pad(jnp.transpose(x), ((0, 0), (0, b_pad - B)))          # (3, b_pad)

    # One packed, sublane-aligned bias buffer (static offsets 0/64/192/256/288).
    bias = jnp.zeros((_B_TOTAL, 1), jnp.float32)
    bias = bias.at[0:64, 0].set(b1)
    bias = bias.at[64:192, 0].set(b2)
    bias = bias.at[192:256, 0].set(b3)
    bias = bias.at[256:288, 0].set(b4)
    bias = bias.at[288:289, 0].set(b5)

    out_t = pl.pallas_call(
        mlp_kernel,
        out_shape=jax.ShapeDtypeStruct((1, b_pad), jnp.float32),
        grid=(n_tiles,),
        in_specs=[
            pl.BlockSpec((3, tb), lambda i: (0, i)),          # x^T: streamed per tile
            pl.BlockSpec((64, 3), lambda i: (0, 0)),          # weights: VMEM-resident
            pl.BlockSpec((128, 64), lambda i: (0, 0)),
            pl.BlockSpec((64, 128), lambda i: (0, 0)),
            pl.BlockSpec((32, 64), lambda i: (0, 0)),
            pl.BlockSpec((32, 1), lambda i: (0, 0)),
            pl.BlockSpec((_B_TOTAL, 1), lambda i: (0, 0)),
        ],
        out_specs=pl.BlockSpec((1, tb), lambda i: (0, i)),    # lane-dense output
        compiler_params=pltpu.CompilerParams(
            dimension_semantics=("parallel",)),               # megacore on v7x
    )(
        xt,
        w1,                                # (64, 3)   f32  (VPU path)
        w2.astype(jnp.bfloat16),           # (128, 64) bf16 (MXU)
        w3.astype(jnp.bfloat16),           # (64, 128) bf16 (MXU)
        w4.astype(jnp.bfloat16),           # (32, 64)  bf16 (MXU)
        jnp.transpose(w5),                 # (32, 1)   f32  (VPU/XLU path)
        bias,
    )

    return jnp.transpose(out_t)[:B]                           # (B, 1)


def xavier_uniform(key, fan_in, fan_out, dtype=jnp.float32):
    # Matches torch.nn.init.xavier_uniform_ (gain=1) on an (out, in) weight.
    limit = float(np.sqrt(6.0 / (fan_in + fan_out)))
    return jax.random.uniform(key, (fan_out, fan_in), dtype, minval=-limit, maxval=limit)


def init_params(key):
    keys = jax.random.split(key, len(_DIMS))
    params = []
    for k, (fi, fo) in zip(keys, _DIMS):
        params.append((xavier_uniform(k, fi, fo), jnp.zeros((fo,), jnp.float32)))
    return params


def reference_forward(x, params):
    # Pure-JAX f32 reference matching the PyTorch module (eval mode).
    h = x
    for i, (w, b) in enumerate(params):
        h = h @ w.T + b
        h = jnp.maximum(h, 0.0) if i < len(params) - 1 else jax.nn.sigmoid(h)
    return h


if __name__ == "__main__":
    key = jax.random.PRNGKey(0)
    k_params, k_x = jax.random.split(key)

    params = init_params(k_params)
    x = jax.random.normal(k_x, (8, 3), dtype=jnp.float32)

    out = simple_classifier_forward(x, params)
    out = jax.block_until_ready(out)
    assert out.shape == (8, 1)

    ref = reference_forward(x, params)
    # bf16 MXU operands + approximate reciprocal vs. the f32 reference:
    # use a bf16-appropriate tolerance (outputs are sigmoid-bounded in [0, 1]).
    np.testing.assert_allclose(np.asarray(out), np.asarray(ref), rtol=2e-2, atol=2e-2)

    print("KERNEL_OK")
</pallas_src>

<mosaic_0001>
module attributes {stable_mosaic.version = 11 : i64} {
  func.func @mlp_kernel(%arg0: i32, %arg1: memref<3x128xf32, #tpu.memory_space<vmem>>, %arg2: memref<64x3xf32, #tpu.memory_space<vmem>>, %arg3: memref<128x64xbf16, #tpu.memory_space<vmem>>, %arg4: memref<64x128xbf16, #tpu.memory_space<vmem>>, %arg5: memref<32x64xbf16, #tpu.memory_space<vmem>>, %arg6: memref<32x1xf32, #tpu.memory_space<vmem>>, %arg7: memref<296x1xf32, #tpu.memory_space<vmem>>, %arg8: memref<1x128xf32, #tpu.memory_space<vmem>>) attributes {dimension_semantics = [#tpu.dimension_semantics<parallel>], iteration_bounds = array<i64: 1>, scalar_prefetch = 0 : i64, scratch_operands = 0 : i64, tpu.core_type = #tpu.core_type<tc>, window_params = [{transform_indices = @transform_0, window_bounds = array<i64: 3, 128>}, {pipeline_mode = #tpu.pipeline_mode<synchronous>, transform_indices = @transform_1, window_bounds = array<i64: 64, 3>}, {pipeline_mode = #tpu.pipeline_mode<synchronous>, transform_indices = @transform_2, window_bounds = array<i64: 128, 64>}, {pipeline_mode = #tpu.pipeline_mode<synchronous>, transform_indices = @transform_3, window_bounds = array<i64: 64, 128>}, {pipeline_mode = #tpu.pipeline_mode<synchronous>, transform_indices = @transform_4, window_bounds = array<i64: 32, 64>}, {pipeline_mode = #tpu.pipeline_mode<synchronous>, transform_indices = @transform_5, window_bounds = array<i64: 32, 1>}, {pipeline_mode = #tpu.pipeline_mode<synchronous>, transform_indices = @transform_6, window_bounds = array<i64: 296, 1>}, {transform_indices = @transform_7, window_bounds = array<i64: 1, 128>}]} {
    %c0 = arith.constant 0 : index
    %c0_0 = arith.constant 0 : index
    %0 = vector.load %arg1[%c0, %c0_0] : memref<3x128xf32, #tpu.memory_space<vmem>>, vector<3x128xf32>
    %c0_1 = arith.constant 0 : index
    %c0_2 = arith.constant 0 : index
    %1 = vector.load %arg7[%c0_1, %c0_2] : memref<296x1xf32, #tpu.memory_space<vmem>>, vector<64x1xf32>
    %c64 = arith.constant 64 : index
    %c0_3 = arith.constant 0 : index
    %2 = vector.load %arg7[%c64, %c0_3] : memref<296x1xf32, #tpu.memory_space<vmem>>, vector<128x1xf32>
    %c192 = arith.constant 192 : index
    %c0_4 = arith.constant 0 : index
    %3 = vector.load %arg7[%c192, %c0_4] : memref<296x1xf32, #tpu.memory_space<vmem>>, vector<64x1xf32>
    %c256 = arith.constant 256 : index
    %c0_5 = arith.constant 0 : index
    %4 = vector.load %arg7[%c256, %c0_5] : memref<296x1xf32, #tpu.memory_space<vmem>>, vector<32x1xf32>
    %c288 = arith.constant 288 : index
    %c0_6 = arith.constant 0 : index
    %5 = vector.load %arg7[%c288, %c0_6] : memref<296x1xf32, #tpu.memory_space<vmem>>, vector<1x1xf32>
    %c0_7 = arith.constant 0 : index
    %c0_8 = arith.constant 0 : index
    %6 = vector.load %arg2[%c0_7, %c0_8] : memref<64x3xf32, #tpu.memory_space<vmem>>, vector<64x3xf32>
    %7 = vector.extract_strided_slice %6 {offsets = [0, 0], sizes = [64, 1], strides = [1, 1]} : vector<64x3xf32> to vector<64x1xf32>
    %8 = vector.extract_strided_slice %0 {offsets = [0, 0], sizes = [1, 128], strides = [1, 1]} : vector<3x128xf32> to vector<1x128xf32>
    %9 = vector.broadcast %7 : vector<64x1xf32> to vector<64x128xf32>
    %10 = vector.broadcast %8 : vector<1x128xf32> to vector<64x128xf32>
    %11 = arith.mulf %9, %10 : vector<64x128xf32>
    %12 = vector.extract_strided_slice %6 {offsets = [0, 1], sizes = [64, 1], strides = [1, 1]} : vector<64x3xf32> to vector<64x1xf32>
    %13 = vector.extract_strided_slice %0 {offsets = [1, 0], sizes = [1, 128], strides = [1, 1]} : vector<3x128xf32> to vector<1x128xf32>
    %14 = vector.broadcast %12 : vector<64x1xf32> to vector<64x128xf32>
    %15 = vector.broadcast %13 : vector<1x128xf32> to vector<64x128xf32>
    %16 = arith.mulf %14, %15 : vector<64x128xf32>
    %17 = arith.addf %11, %16 : vector<64x128xf32>
    %18 = vector.extract_strided_slice %6 {offsets = [0, 2], sizes = [64, 1], strides = [1, 1]} : vector<64x3xf32> to vector<64x1xf32>
    %19 = vector.extract_strided_slice %0 {offsets = [2, 0], sizes = [1, 128], strides = [1, 1]} : vector<3x128xf32> to vector<1x128xf32>
    %20 = vector.broadcast %18 : vector<64x1xf32> to vector<64x128xf32>
    %21 = vector.broadcast %19 : vector<1x128xf32> to vector<64x128xf32>
    %22 = arith.mulf %20, %21 : vector<64x128xf32>
    %23 = arith.addf %17, %22 : vector<64x128xf32>
    %24 = vector.broadcast %1 : vector<64x1xf32> to vector<64x128xf32>
    %25 = arith.addf %23, %24 : vector<64x128xf32>
    %cst = arith.constant 0.000000e+00 : f32
    %26 = vector.broadcast %cst : f32 to vector<64x128xf32>
    %27 = arith.maximumf %25, %26 : vector<64x128xf32>
    %c0_9 = arith.constant 0 : index
    %c0_10 = arith.constant 0 : index
    %28 = vector.load %arg3[%c0_9, %c0_10] : memref<128x64xbf16, #tpu.memory_space<vmem>>, vector<128x64xbf16>
    %29 = arith.truncf %27 : vector<64x128xf32> to vector<64x128xbf16>
    %cst_11 = arith.constant dense<0.000000e+00> : vector<128x128xf32>
    %30 = tpu.matmul %28, %29, %cst_11 {dimension_numbers = #tpu.dot_dimension_numbers<[1], [0], [0], [1], [0, 0, 1, 1], [], []>} : vector<128x64xbf16>, vector<64x128xbf16>, vector<128x128xf32> -> vector<128x128xf32>
    %31 = vector.broadcast %2 : vector<128x1xf32> to vector<128x128xf32>
    %32 = arith.addf %30, %31 : vector<128x128xf32>
    %cst_12 = arith.constant 0.000000e+00 : f32
    %33 = vector.broadcast %cst_12 : f32 to vector<128x128xf32>
    %34 = arith.maximumf %32, %33 : vector<128x128xf32>
    %c0_13 = arith.constant 0 : index
    %c0_14 = arith.constant 0 : index
    %35 = vector.load %arg4[%c0_13, %c0_14] : memref<64x128xbf16, #tpu.memory_space<vmem>>, vector<64x128xbf16>
    %36 = arith.truncf %34 : vector<128x128xf32> to vector<128x128xbf16>
    %cst_15 = arith.constant dense<0.000000e+00> : vector<64x128xf32>
    %37 = tpu.matmul %35, %36, %cst_15 {dimension_numbers = #tpu.dot_dimension_numbers<[1], [0], [0], [1], [0, 0, 1, 1], [], []>} : vector<64x128xbf16>, vector<128x128xbf16>, vector<64x128xf32> -> vector<64x128xf32>
    %38 = vector.broadcast %3 : vector<64x1xf32> to vector<64x128xf32>
    %39 = arith.addf %37, %38 : vector<64x128xf32>
    %cst_16 = arith.constant 0.000000e+00 : f32
    %40 = vector.broadcast %cst_16 : f32 to vector<64x128xf32>
    %41 = arith.maximumf %39, %40 : vector<64x128xf32>
    %c0_17 = arith.constant 0 : index
    %c0_18 = arith.constant 0 : index
    %42 = vector.load %arg5[%c0_17, %c0_18] : memref<32x64xbf16, #tpu.memory_space<vmem>>, vector<32x64xbf16>
    %43 = arith.truncf %41 : vector<64x128xf32> to vector<64x128xbf16>
    %cst_19 = arith.constant dense<0.000000e+00> : vector<32x128xf32>
    %44 = tpu.matmul %42, %43, %cst_19 {dimension_numbers = #tpu.dot_dimension_numbers<[1], [0], [0], [1], [0, 0, 1, 1], [], []>} : vector<32x64xbf16>, vector<64x128xbf16>, vector<32x128xf32> -> vector<32x128xf32>
    %45 = vector.broadcast %4 : vector<32x1xf32> to vector<32x128xf32>
    %46 = arith.addf %44, %45 : vector<32x128xf32>
    %cst_20 = arith.constant 0.000000e+00 : f32
    %47 = vector.broadcast %cst_20 : f32 to vector<32x128xf32>
    %48 = arith.maximumf %46, %47 : vector<32x128xf32>
    %c0_21 = arith.constant 0 : index
    %c0_22 = arith.constant 0 : index
    %49 = vector.load %arg6[%c0_21, %c0_22] : memref<32x1xf32, #tpu.memory_space<vmem>>, vector<32x1xf32>
    %50 = vector.broadcast %49 : vector<32x1xf32> to vector<32x128xf32>
    %51 = arith.mulf %50, %48 : vector<32x128xf32>
    %cst_23 = arith.constant dense<0.000000e+00> : vector<128xf32>
    %52 = vector.multi_reduction <add>, %51, %cst_23 [0] : vector<32x128xf32> to vector<128xf32>
    %53 = vector.shape_cast %52 : vector<128xf32> to vector<1x128xf32>
    %54 = vector.broadcast %5 : vector<1x1xf32> to vector<1x128xf32>
    %55 = arith.addf %53, %54 : vector<1x128xf32>
    %cst_24 = arith.constant 0.000000e+00 : f32
    %56 = vector.broadcast %cst_24 : f32 to vector<1x128xf32>
    %57 = arith.subf %56, %55 : vector<1x128xf32>
    %58 = math.exp %57 : vector<1x128xf32>
    %cst_25 = arith.constant 1.000000e+00 : f32
    %59 = vector.broadcast %cst_25 : f32 to vector<1x128xf32>
    %60 = arith.addf %59, %58 : vector<1x128xf32>
    %61 = tpu.reciprocal %60 {approx = true} : vector<1x128xf32> -> vector<1x128xf32>
    %c0_26 = arith.constant 0 : index
    %c0_27 = arith.constant 0 : index
    %62 = vector.load %arg8[%c0_26, %c0_27] : memref<1x128xf32, #tpu.memory_space<vmem>>, vector<1x128xf32>
    tpu.vector_store %arg8[%c0_26, %c0_27], %61 {strides = array<i32>} : memref<1x128xf32, #tpu.memory_space<vmem>>, vector<1x128xf32>,
    return
  }
  func.func @transform_0(%arg0: i32) -> (i32, i32) {
    %c0_i32 = arith.constant 0 : i32
    %c0_i32_0 = arith.constant 0 : i32
    return %c0_i32, %arg0 : i32, i32
  }
  func.func @transform_1(%arg0: i32) -> (i32, i32) {
    %c0_i32 = arith.constant 0 : i32
    %c0_i32_0 = arith.constant 0 : i32
    %c0_i32_1 = arith.constant 0 : i32
    return %c0_i32, %c0_i32_0 : i32, i32
  }
  func.func @transform_2(%arg0: i32) -> (i32, i32) {
    %c0_i32 = arith.constant 0 : i32
    %c0_i32_0 = arith.constant 0 : i32
    %c0_i32_1 = arith.constant 0 : i32
    return %c0_i32, %c0_i32_0 : i32, i32
  }
  func.func @transform_3(%arg0: i32) -> (i32, i32) {
    %c0_i32 = arith.constant 0 : i32
    %c0_i32_0 = arith.constant 0 : i32
    %c0_i32_1 = arith.constant 0 : i32
    return %c0_i32, %c0_i32_0 : i32, i32
  }
  func.func @transform_4(%arg0: i32) -> (i32, i32) {
    %c0_i32 = arith.constant 0 : i32
    %c0_i32_0 = arith.constant 0 : i32
    %c0_i32_1 = arith.constant 0 : i32
    return %c0_i32, %c0_i32_0 : i32, i32
  }
  func.func @transform_5(%arg0: i32) -> (i32, i32) {
    %c0_i32 = arith.constant 0 : i32
    %c0_i32_0 = arith.constant 0 : i32
    %c0_i32_1 = arith.constant 0 : i32
    return %c0_i32, %c0_i32_0 : i32, i32
  }
  func.func @transform_6(%arg0: i32) -> (i32, i32) {
    %c0_i32 = arith.constant 0 : i32
    %c0_i32_0 = arith.constant 0 : i32
    %c0_i32_1 = arith.constant 0 : i32
    return %c0_i32, %c0_i32_0 : i32, i32
  }
  func.func @transform_7(%arg0: i32) -> (i32, i32) {
    %c0_i32 = arith.constant 0 : i32
    %c0_i32_0 = arith.constant 0 : i32
    return %c0_i32, %arg0 : i32, i32
  }
}

</mosaic_0001>

<llo_original>
// kernel: simple_classifier_forward.1
$region0: #{simple_classifier_forward.1}
  #allocation0 [shape = 'u32[]', space=smem, size = 0x4, offset = 0x4, fixed_abs, tag = 'smem constant byte address 0x4 - core index']
  #allocation1 [shape = 'u32[144,128]{1,0:T(1,128)}', space=vmem, size = 0x12000, scoped, tag = 'internal scratch']
  %s0 = inlined_call_operand.vmem [shape: f32[3,128], index: 0, kind: input, shape index: {}]
  %s1 = inlined_call_operand.vmem [shape: f32[64,3], index: 1, kind: input, shape index: {}]
  %s2 = inlined_call_operand.vmem [shape: bf16[128,64], index: 2, kind: input, shape index: {}]
  %s3 = inlined_call_operand.vmem [shape: bf16[64,128], index: 3, kind: input, shape index: {}]
  %s4 = inlined_call_operand.vmem [shape: bf16[32,64], index: 4, kind: input, shape index: {}]
  %s5 = inlined_call_operand.vmem [shape: f32[32,1], index: 5, kind: input, shape index: {}]
  %s6 = inlined_call_operand.vmem [shape: f32[296,1], index: 6, kind: input, shape index: {}]
  %s7 = inlined_call_operand.vmem [shape: f32[1,128], index: 7, kind: output, shape index: {}]
  %s8 = sld [smem:[#allocation0]]
  $region38: #{simple_classifier_forward.1} parent=0
    _
  %s10 = ssub.s32 1, %s8
  %s11 = scalar_select 0, %s10, %s8
  // Predicated region
  $region2: #{simple_classifier_forward.1} parent=0 // pred_check
    _
  $region3: #{simple_classifier_forward.1} parent=0 // pred_check_branch
    %13 = sbr.rel (0) target = $region5
  $region4: #{simple_classifier_forward.1} parent=0 // pred_region
    _
  $region5: #{simple_classifier_forward.1} parent=0 // pred_fallthru
    _
  // Predicated region
  $region6: #{simple_classifier_forward.1} parent=0 // pred_check
    _
  $region7: #{simple_classifier_forward.1} parent=0 // pred_check_branch
    %15 = sbr.rel (0) target = $region9
  $region8: #{simple_classifier_forward.1} parent=0 // pred_region
    _
  $region9: #{simple_classifier_forward.1} parent=0 // pred_fallthru
    _
  // Predicated region
  $region10: #{simple_classifier_forward.1} parent=0 // pred_check
    _
  $region11: #{simple_classifier_forward.1} parent=0 // pred_check_branch
    %17 = sbr.rel (0) target = $region13
  $region12: #{simple_classifier_forward.1} parent=0 // pred_region
    _
  $region13: #{simple_classifier_forward.1} parent=0 // pred_fallthru
    _
  // Predicated region
  $region14: #{simple_classifier_forward.1} parent=0 // pred_check
    _
  $region15: #{simple_classifier_forward.1} parent=0 // pred_check_branch
    %19 = sbr.rel (0) target = $region17
  $region16: #{simple_classifier_forward.1} parent=0 // pred_region
    _
  $region17: #{simple_classifier_forward.1} parent=0 // pred_fallthru
    _
  // Predicated region
  $region18: #{simple_classifier_forward.1} parent=0 // pred_check
    _
  $region19: #{simple_classifier_forward.1} parent=0 // pred_check_branch
    %21 = sbr.rel (0) target = $region21
  $region20: #{simple_classifier_forward.1} parent=0 // pred_region
    _
  $region21: #{simple_classifier_forward.1} parent=0 // pred_fallthru
    _
  // Predicated region
  $region22: #{simple_classifier_forward.1} parent=0 // pred_check
    _
  $region23: #{simple_classifier_forward.1} parent=0 // pred_check_branch
    %23 = sbr.rel (0) target = $region25
  $region24: #{simple_classifier_forward.1} parent=0 // pred_region
    _
  $region25: #{simple_classifier_forward.1} parent=0 // pred_fallthru
    _
  // Predicated region
  $region26: #{simple_classifier_forward.1} parent=0 // pred_check
    _
  $region27: #{simple_classifier_forward.1} parent=0 // pred_check_branch
    %25 = sbr.rel (0) target = $region29
  $region28: #{simple_classifier_forward.1} parent=0 // pred_region
    _
  $region29: #{simple_classifier_forward.1} parent=0 // pred_fallthru
    _
  %v27 = vld [vmem:[%s0] sm:$0x7]
  %v28 = vld [vmem:[%s6] sm:$0xff]
  %v29 = vld [vmem:[%s6 + $0x8] sm:$0xff]
  %v30 = vld [vmem:[%s6 + $0x10] sm:$0xff]
  %v31 = vld [vmem:[%s6 + $0x18] sm:$0xff]
  %v32 = vld [vmem:[%s6 + $0x20] sm:$0xff]
  %v33 = vld [vmem:[%s6 + $0x28] sm:$0xff]
  %v34 = vld [vmem:[%s6 + $0x30] sm:$0xff]
  %v35 = vld [vmem:[%s6 + $0x38] sm:$0xff]
  %v36 = vld [vmem:[%s6 + $0x40] sm:$0xff]
  %v37 = vld [vmem:[%s6 + $0x48] sm:$0xff]
  %v38 = vld [vmem:[%s6 + $0x50] sm:$0xff]
  %v39 = vld [vmem:[%s6 + $0x58] sm:$0xff]
  %v40 = vld [vmem:[%s6 + $0x60] sm:$0xff]
  %v41 = vld [vmem:[%s6 + $0x68] sm:$0xff]
  %v42 = vld [vmem:[%s6 + $0x70] sm:$0xff]
  %v43 = vld [vmem:[%s6 + $0x78] sm:$0xff]
  %v44 = vld [vmem:[%s6 + $0x80] sm:$0xff]
  %v45 = vld [vmem:[%s6 + $0x88] sm:$0xff]
  %v46 = vld [vmem:[%s6 + $0x90] sm:$0xff]
  %v47 = vld [vmem:[%s6 + $0x98] sm:$0xff]
  %v48 = vld [vmem:[%s6 + $0xa0] sm:$0xff]
  %v49 = vld [vmem:[%s6 + $0xa8] sm:$0xff]
  %v50 = vld [vmem:[%s6 + $0xb0] sm:$0xff]
  %v51 = vld [vmem:[%s6 + $0xb8] sm:$0xff]
  %v52 = vld [vmem:[%s6 + $0xc0] sm:$0xff]
  %v53 = vld [vmem:[%s6 + $0xc8] sm:$0xff]
  %v54 = vld [vmem:[%s6 + $0xd0] sm:$0xff]
  %v55 = vld [vmem:[%s6 + $0xd8] sm:$0xff]
  %v56 = vld [vmem:[%s6 + $0xe0] sm:$0xff]
  %v57 = vld [vmem:[%s6 + $0xe8] sm:$0xff]
  %v58 = vld [vmem:[%s6 + $0xf0] sm:$0xff]
  %v59 = vld [vmem:[%s6 + $0xf8] sm:$0xff]
  %v60 = vld [vmem:[%s6 + $0x100] sm:$0xff]
  %v61 = vld [vmem:[%s6 + $0x108] sm:$0xff]
  %v62 = vld [vmem:[%s6 + $0x110] sm:$0xff]
  %v63 = vld [vmem:[%s6 + $0x118] sm:$0xff]
  %v64 = vld [vmem:[%s6 + $0x120] sm:$0x1]
  %v65 = vld [vmem:[%s1] sm:$0xff]
  %v66 = vld [vmem:[%s1 + $0x8] sm:$0xff]
  %v67 = vld [vmem:[%s1 + $0x10] sm:$0xff]
  %v68 = vld [vmem:[%s1 + $0x18] sm:$0xff]
  %v69 = vld [vmem:[%s1 + $0x20] sm:$0xff]
  %v70 = vld [vmem:[%s1 + $0x28] sm:$0xff]
  %v71 = vld [vmem:[%s1 + $0x30] sm:$0xff]
  %v72 = vld [vmem:[%s1 + $0x38] sm:$0xff]
  %74 = vset.pattern.permute.xlu0 0
  %75 = vperm.xlu0 %74, %v65
  %v76 = vpop.permute.xlu0 %75
  %79 = vset.pattern.permute.xlu0 0
  %80 = vperm.xlu0 %79, %v66
  %v81 = vpop.permute.xlu0 %80
  %84 = vset.pattern.permute.xlu0 0
  %85 = vperm.xlu0 %84, %v67
  %v86 = vpop.permute.xlu0 %85
  %89 = vset.pattern.permute.xlu0 0
  %90 = vperm.xlu0 %89, %v68
  %v91 = vpop.permute.xlu0 %90
  %94 = vset.pattern.permute.xlu0 0
  %95 = vperm.xlu0 %94, %v69
  %v96 = vpop.permute.xlu0 %95
  %99 = vset.pattern.permute.xlu0 0
  %100 = vperm.xlu0 %99, %v70
  %v101 = vpop.permute.xlu0 %100
  %104 = vset.pattern.permute.xlu0 0
  %105 = vperm.xlu0 %104, %v71
  %v106 = vpop.permute.xlu0 %105
  %109 = vset.pattern.permute.xlu0 0
  %110 = vperm.xlu0 %109, %v72
  %v111 = vpop.permute.xlu0 %110
  %v113 = vlaneseq
  %v114 = vshrl.u32 %v113, 7
  %v115 = vsub.s32 0, %v114
  %v116 = vrot.slane %v27, %v115
  %v117 = vmul.f32 %v76, %v116
  %v118 = vmul.f32 %v81, %v116
  %v119 = vmul.f32 %v86, %v116
  %v120 = vmul.f32 %v91, %v116
  %v121 = vmul.f32 %v96, %v116
  %v122 = vmul.f32 %v101, %v116
  %v123 = vmul.f32 %v106, %v116
  %v124 = vmul.f32 %v111, %v116
  %125 = vset.pattern.permute.xlu0 1
  %126 = vperm.xlu0 %125, %v65
  %v127 = vpop.permute.xlu0 %126
  %129 = vset.pattern.permute.xlu0 1
  %130 = vperm.xlu0 %129, %v66
  %v131 = vpop.permute.xlu0 %130
  %133 = vset.pattern.permute.xlu0 1
  %134 = vperm.xlu0 %133, %v67
  %v135 = vpop.permute.xlu0 %134
  %137 = vset.pattern.permute.xlu0 1
  %138 = vperm.xlu0 %137, %v68
  %v139 = vpop.permute.xlu0 %138
  %141 = vset.pattern.permute.xlu0 1
  %142 = vperm.xlu0 %141, %v69
  %v143 = vpop.permute.xlu0 %142
  %145 = vset.pattern.permute.xlu0 1
  %146 = vperm.xlu0 %145, %v70
  %v147 = vpop.permute.xlu0 %146
  %149 = vset.pattern.permute.xlu0 1
  %150 = vperm.xlu0 %149, %v71
  %v151 = vpop.permute.xlu0 %150
  %153 = vset.pattern.permute.xlu0 1
  %154 = vperm.xlu0 %153, %v72
  %v155 = vpop.permute.xlu0 %154
  %v157 = vlaneseq
  %v158 = vshrl.u32 %v157, 7
  %v159 = vsub.s32 1, %v158
  %v160 = vrot.slane %v27, %v159
  %v161 = vmul.f32 %v127, %v160
  %v162 = vmul.f32 %v131, %v160
  %v163 = vmul.f32 %v135, %v160
  %v164 = vmul.f32 %v139, %v160
  %v165 = vmul.f32 %v143, %v160
  %v166 = vmul.f32 %v147, %v160
  %v167 = vmul.f32 %v151, %v160
  %v168 = vmul.f32 %v155, %v160
  %v169 = vadd.f32 %v117, %v161
  %v170 = vadd.f32 %v118, %v162
  %v171 = vadd.f32 %v119, %v163
  %v172 = vadd.f32 %v120, %v164
  %v173 = vadd.f32 %v121, %v165
  %v174 = vadd.f32 %v122, %v166
  %v175 = vadd.f32 %v123, %v167
  %v176 = vadd.f32 %v124, %v168
  %177 = vset.pattern.permute.xlu0 2
  %178 = vperm.xlu0 %177, %v65
  %v179 = vpop.permute.xlu0 %178
  %181 = vset.pattern.permute.xlu0 2
  %182 = vperm.xlu0 %181, %v66
  %v183 = vpop.permute.xlu0 %182
  %185 = vset.pattern.permute.xlu0 2
  %186 = vperm.xlu0 %185, %v67
  %v187 = vpop.permute.xlu0 %186
  %189 = vset.pattern.permute.xlu0 2
  %190 = vperm.xlu0 %189, %v68
  %v191 = vpop.permute.xlu0 %190
  %193 = vset.pattern.permute.xlu0 2
  %194 = vperm.xlu0 %193, %v69
  %v195 = vpop.permute.xlu0 %194
  %197 = vset.pattern.permute.xlu0 2
  %198 = vperm.xlu0 %197, %v70
  %v199 = vpop.permute.xlu0 %198
  %201 = vset.pattern.permute.xlu0 2
  %202 = vperm.xlu0 %201, %v71
  %v203 = vpop.permute.xlu0 %202
  %205 = vset.pattern.permute.xlu0 2
  %206 = vperm.xlu0 %205, %v72
  %v207 = vpop.permute.xlu0 %206
  %v209 = vlaneseq
  %v210 = vshrl.u32 %v209, 7
  %v211 = vsub.s32 2, %v210
  %v212 = vrot.slane %v27, %v211
  %v213 = vmul.f32 %v179, %v212
  %v214 = vmul.f32 %v183, %v212
  %v215 = vmul.f32 %v187, %v212
  %v216 = vmul.f32 %v191, %v212
  %v217 = vmul.f32 %v195, %v212
  %v218 = vmul.f32 %v199, %v212
  %v219 = vmul.f32 %v203, %v212
  %v220 = vmul.f32 %v207, %v212
  %v221 = vadd.f32 %v169, %v213
  %v222 = vadd.f32 %v170, %v214
  %v223 = vadd.f32 %v171, %v215
  %v224 = vadd.f32 %v172, %v216
  %v225 = vadd.f32 %v173, %v217
  %v226 = vadd.f32 %v174, %v218
  %v227 = vadd.f32 %v175, %v219
  %v228 = vadd.f32 %v176, %v220
  %230 = vset.pattern.permute.xlu0 0
  %231 = vperm.xlu0 %230, %v28
  %v232 = vpop.permute.xlu0 %231
  %235 = vset.pattern.permute.xlu0 0
  %236 = vperm.xlu0 %235, %v29
  %v237 = vpop.permute.xlu0 %236
  %240 = vset.pattern.permute.xlu0 0
  %241 = vperm.xlu0 %240, %v30
  %v242 = vpop.permute.xlu0 %241
  %245 = vset.pattern.permute.xlu0 0
  %246 = vperm.xlu0 %245, %v31
  %v247 = vpop.permute.xlu0 %246
  %250 = vset.pattern.permute.xlu0 0
  %251 = vperm.xlu0 %250, %v32
  %v252 = vpop.permute.xlu0 %251
  %255 = vset.pattern.permute.xlu0 0
  %256 = vperm.xlu0 %255, %v33
  %v257 = vpop.permute.xlu0 %256
  %260 = vset.pattern.permute.xlu0 0
  %261 = vperm.xlu0 %260, %v34
  %v262 = vpop.permute.xlu0 %261
  %265 = vset.pattern.permute.xlu0 0
  %266 = vperm.xlu0 %265, %v35
  %v267 = vpop.permute.xlu0 %266
  %v269 = vadd.f32 %v221, %v232
  %v270 = vadd.f32 %v222, %v237
  %v271 = vadd.f32 %v223, %v242
  %v272 = vadd.f32 %v224, %v247
  %v273 = vadd.f32 %v225, %v252
  %v274 = vadd.f32 %v226, %v257
  %v275 = vadd.f32 %v227, %v262
  %v276 = vadd.f32 %v228, %v267
  %v277 = vmax.f32 %v269, 0.0
  %v278 = vmax.f32 %v270, 0.0
  %v279 = vmax.f32 %v271, 0.0
  %v280 = vmax.f32 %v272, 0.0
  %v281 = vmax.f32 %v273, 0.0
  %v282 = vmax.f32 %v274, 0.0
  %v283 = vmax.f32 %v275, 0.0
  %v284 = vmax.f32 %v276, 0.0
  %v285 = vld [vmem:[%s2] sm:$0xf]
  %v286 = vld [vmem:[%s2 + $0x4] sm:$0xf]
  %v287 = vld [vmem:[%s2 + $0x8] sm:$0xf]
  %v288 = vld [vmem:[%s2 + $0xc] sm:$0xf]
  %v289 = vld [vmem:[%s2 + $0x10] sm:$0xf]
  %v290 = vld [vmem:[%s2 + $0x14] sm:$0xf]
  %v291 = vld [vmem:[%s2 + $0x18] sm:$0xf]
  %v292 = vld [vmem:[%s2 + $0x1c] sm:$0xf]
  %v293 = vld [vmem:[%s2 + $0x20] sm:$0xf]
  %v294 = vld [vmem:[%s2 + $0x24] sm:$0xf]
  %v295 = vld [vmem:[%s2 + $0x28] sm:$0xf]
  %v296 = vld [vmem:[%s2 + $0x2c] sm:$0xf]
  %v297 = vld [vmem:[%s2 + $0x30] sm:$0xf]
  %v298 = vld [vmem:[%s2 + $0x34] sm:$0xf]
  %v299 = vld [vmem:[%s2 + $0x38] sm:$0xf]
  %v300 = vld [vmem:[%s2 + $0x3c] sm:$0xf]
  %v301 = vpack.c.bf16 %v278, %v277
  %v302 = vpack.c.bf16 %v280, %v279
  %v303 = vpack.c.bf16 %v282, %v281
  %v304 = vpack.c.bf16 %v284, %v283
  %306 = vset.pattern.permute.xlu0 0
  %307 = vperm.xlu0 %306, %v36
  %v308 = vpop.permute.xlu0 %307
  %311 = vset.pattern.permute.xlu0 0
  %312 = vperm.xlu0 %311, %v37
  %v313 = vpop.permute.xlu0 %312
  %316 = vset.pattern.permute.xlu0 0
  %317 = vperm.xlu0 %316, %v38
  %v318 = vpop.permute.xlu0 %317
  %321 = vset.pattern.permute.xlu0 0
  %322 = vperm.xlu0 %321, %v39
  %v323 = vpop.permute.xlu0 %322
  %326 = vset.pattern.permute.xlu0 0
  %327 = vperm.xlu0 %326, %v40
  %v328 = vpop.permute.xlu0 %327
  %331 = vset.pattern.permute.xlu0 0
  %332 = vperm.xlu0 %331, %v41
  %v333 = vpop.permute.xlu0 %332
  %336 = vset.pattern.permute.xlu0 0
  %337 = vperm.xlu0 %336, %v42
  %v338 = vpop.permute.xlu0 %337
  %341 = vset.pattern.permute.xlu0 0
  %342 = vperm.xlu0 %341, %v43
  %v343 = vpop.permute.xlu0 %342
  %346 = vset.pattern.permute.xlu0 0
  %347 = vperm.xlu0 %346, %v44
  %v348 = vpop.permute.xlu0 %347
  %351 = vset.pattern.permute.xlu0 0
  %352 = vperm.xlu0 %351, %v45
  %v353 = vpop.permute.xlu0 %352
  %356 = vset.pattern.permute.xlu0 0
  %357 = vperm.xlu0 %356, %v46
  %v358 = vpop.permute.xlu0 %357
  %361 = vset.pattern.permute.xlu0 0
  %362 = vperm.xlu0 %361, %v47
  %v363 = vpop.permute.xlu0 %362
  %366 = vset.pattern.permute.xlu0 0
  %367 = vperm.xlu0 %366, %v48
  %v368 = vpop.permute.xlu0 %367
  %371 = vset.pattern.permute.xlu0 0
  %372 = vperm.xlu0 %371, %v49
  %v373 = vpop.permute.xlu0 %372
  %376 = vset.pattern.permute.xlu0 0
  %377 = vperm.xlu0 %376, %v50
  %v378 = vpop.permute.xlu0 %377
  %381 = vset.pattern.permute.xlu0 0
  %382 = vperm.xlu0 %381, %v51
  %v383 = vpop.permute.xlu0 %382
  %v401 = vunpack.c.l.b16 %v285
  %v402 = vunpack.c.l.b16 %v286
  %v403 = vunpack.c.l.b16 %v287
  %v404 = vunpack.c.l.b16 %v288
  %v405 = vunpack.c.l.b16 %v289
  %v406 = vunpack.c.l.b16 %v290
  %v407 = vunpack.c.l.b16 %v291
  %v408 = vunpack.c.l.b16 %v292
  %v409 = vunpack.c.l.b16 %v293
  %v410 = vunpack.c.l.b16 %v294
  %v411 = vunpack.c.l.b16 %v295
  %v412 = vunpack.c.l.b16 %v296
  %v413 = vunpack.c.l.b16 %v297
  %v414 = vunpack.c.l.b16 %v298
  %v415 = vunpack.c.l.b16 %v299
  %v416 = vunpack.c.l.b16 %v300
  %v417 = vpack.c.b16 %v402, %v401
  %v418 = vpack.c.b16 %v404, %v403
  %v419 = vpack.c.b16 %v406, %v405
  %v420 = vpack.c.b16 %v408, %v407
  %v421 = vpack.c.b16 %v410, %v409
  %v422 = vpack.c.b16 %v412, %v411
  %v423 = vpack.c.b16 %v414, %v413
  %v424 = vpack.c.b16 %v416, %v415
  %vm425 = vcmask 523264
  %v427 = vsel %vm425, %v417, 0
  %v430 = vsel %vm425, %v418, 0
  %v433 = vsel %vm425, %v419, 0
  %v436 = vsel %vm425, %v420, 0
  %v439 = vsel %vm425, %v421, 0
  %v442 = vsel %vm425, %v422, 0
  %v445 = vsel %vm425, %v423, 0
  %v448 = vsel %vm425, %v424, 0
  %450 = vmatprep.subr.bf16.mxu0 0
  %451 = vmatpush1.bf16.msra.mxu0 %v301
  %452 = vmatprep.subr.bf16.mxu0 0
  %453 = vmatpush1.bf16.msra.mxu0 %v302
  %454 = vmatprep.subr.bf16.mxu0 0
  %455 = vmatpush1.bf16.msra.mxu0 %v303
  %456 = vmatprep.subr.bf16.mxu0 0
  %457 = vmatpush1.bf16.msra.mxu0 %v304
  %458 = vmatprep.subr.bf16.mxu0 0
  %459 = vmatpush1.bf16.msra.mxu0 0
  %460 = vmatprep.subr.bf16.mxu0 0
  %461 = vmatpush1.bf16.msra.mxu0 0
  %462 = vmatprep.subr.bf16.mxu0 0
  %463 = vmatpush1.bf16.msra.mxu0 0
  %464 = vmatprep.subr.bf16.mxu0 0
  %465 = vmatpush1.bf16.msra.mxu0 0
  %466 = vmatprep.subr.bf16.mxu0 0
  %467 = vmatpush1.bf16.msra.mxu0 0
  %468 = vmatprep.subr.bf16.mxu0 0
  %469 = vmatpush1.bf16.msra.mxu0 0
  %470 = vmatprep.subr.bf16.mxu0 0
  %471 = vmatpush1.bf16.msra.mxu0 0
  %472 = vmatprep.subr.bf16.mxu0 0
  %473 = vmatpush1.bf16.msra.mxu0 0
  %474 = vmatprep.subr.bf16.mxu0 0
  %475 = vmatpush1.bf16.msra.mxu0 0
  %476 = vmatprep.subr.bf16.mxu0 0
  %477 = vmatpush1.bf16.msra.mxu0 0
  %478 = vmatprep.subr.bf16.mxu0 0
  %479 = vmatpush1.bf16.msra.mxu0 0
  %480 = vmatprep.subr.bf16.mxu0 0
  %481 = vmatpush1.bf16.msra.mxu0 0
  %482 = vmatprep.mubr.bf16.mxu0 0
  %483 = vmatmul.mubr.bf16.gmra.mrb[0].mxu0 %v427
  %v484 = vpop.f32.mrb[0].mxu0
  %v485 = vadd.f32 %v308, %v484
  %v486 = vpop.f32.mrb[0].mxu0
  %v487 = vpop.f32.mrb[0].mxu0
  %v488 = vadd.f32 %v313, %v487
  %v489 = vpop.f32.mrb[0].mxu0
  %490 = vmatprep.mubr.bf16.mxu0 0
  %491 = vmatmul.mubr.bf16.gmra.mrb[0].mxu0 %v430
  %v492 = vpop.f32.mrb[0].mxu0
  %v493 = vadd.f32 %v318, %v492
  %v494 = vpop.f32.mrb[0].mxu0
  %v495 = vpop.f32.mrb[0].mxu0
  %v496 = vadd.f32 %v323, %v495
  %v497 = vpop.f32.mrb[0].mxu0
  %498 = vmatprep.mubr.bf16.mxu0 0
  %499 = vmatmul.mubr.bf16.gmra.mrb[0].mxu0 %v433
  %v500 = vpop.f32.mrb[0].mxu0
  %v501 = vadd.f32 %v328, %v500
  %v502 = vpop.f32.mrb[0].mxu0
  %v503 = vpop.f32.mrb[0].mxu0
  %v504 = vadd.f32 %v333, %v503
  %v505 = vpop.f32.mrb[0].mxu0
  %506 = vmatprep.mubr.bf16.mxu0 0
  %507 = vmatmul.mubr.bf16.gmra.mrb[0].mxu0 %v436
  %v508 = vpop.f32.mrb[0].mxu0
  %v509 = vadd.f32 %v338, %v508
  %v510 = vpop.f32.mrb[0].mxu0
  %v511 = vpop.f32.mrb[0].mxu0
  %v512 = vadd.f32 %v343, %v511
  %v513 = vpop.f32.mrb[0].mxu0
  %514 = vmatprep.mubr.bf16.mxu0 0
  %515 = vmatmul.mubr.bf16.gmra.mrb[0].mxu0 %v439
  %v516 = vpop.f32.mrb[0].mxu0
  %v517 = vadd.f32 %v348, %v516
  %v518 = vpop.f32.mrb[0].mxu0
  %v519 = vpop.f32.mrb[0].mxu0
  %v520 = vadd.f32 %v353, %v519
  %v521 = vpop.f32.mrb[0].mxu0
  %522 = vmatprep.mubr.bf16.mxu0 0
  %523 = vmatmul.mubr.bf16.gmra.mrb[0].mxu0 %v442
  %v524 = vpop.f32.mrb[0].mxu0
  %v525 = vadd.f32 %v358, %v524
  %v526 = vpop.f32.mrb[0].mxu0
  %v527 = vpop.f32.mrb[0].mxu0
  %v528 = vadd.f32 %v363, %v527
  %v529 = vpop.f32.mrb[0].mxu0
  %530 = vmatprep.mubr.bf16.mxu0 0
  %531 = vmatmul.mubr.bf16.gmra.mrb[0].mxu0 %v445
  %v532 = vpop.f32.mrb[0].mxu0
  %v533 = vadd.f32 %v368, %v532
  %v534 = vpop.f32.mrb[0].mxu0
  %v535 = vpop.f32.mrb[0].mxu0
  %v536 = vadd.f32 %v373, %v535
  %v537 = vpop.f32.mrb[0].mxu0
  %538 = vmatprep.mubr.bf16.mxu0 0
  %539 = vmatmul.mubr.bf16.gmra.mrb[0].mxu0 %v448
  %v540 = vpop.f32.mrb[0].mxu0
  %v541 = vadd.f32 %v378, %v540
  %v542 = vpop.f32.mrb[0].mxu0
  %v543 = vpop.f32.mrb[0].mxu0
  %v544 = vadd.f32 %v383, %v543
  %v545 = vpop.f32.mrb[0].mxu0
  %546 = vdwg.mxu0
  %v547 = vmax.f32 %v485, 0.0
  %v548 = vmax.f32 %v488, 0.0
  %v549 = vmax.f32 %v493, 0.0
  %v550 = vmax.f32 %v496, 0.0
  %v551 = vmax.f32 %v501, 0.0
  %v552 = vmax.f32 %v504, 0.0
  %v553 = vmax.f32 %v509, 0.0
  %v554 = vmax.f32 %v512, 0.0
  %v555 = vmax.f32 %v517, 0.0
  %v556 = vmax.f32 %v520, 0.0
  %v557 = vmax.f32 %v525, 0.0
  %v558 = vmax.f32 %v528, 0.0
  %v559 = vmax.f32 %v533, 0.0
  %v560 = vmax.f32 %v536, 0.0
  %v561 = vmax.f32 %v541, 0.0
  %v562 = vmax.f32 %v544, 0.0
  %v563 = vld [vmem:[%s3] sm:$0xf]
  %v564 = vld [vmem:[%s3 + $0x4] sm:$0xf]
  %v565 = vld [vmem:[%s3 + $0x8] sm:$0xf]
  %v566 = vld [vmem:[%s3 + $0xc] sm:$0xf]
  %v567 = vld [vmem:[%s3 + $0x10] sm:$0xf]
  %v568 = vld [vmem:[%s3 + $0x14] sm:$0xf]
  %v569 = vld [vmem:[%s3 + $0x18] sm:$0xf]
  %v570 = vld [vmem:[%s3 + $0x1c] sm:$0xf]
  %v571 = vpack.c.bf16 %v548, %v547
  %v572 = vpack.c.bf16 %v550, %v549
  %v573 = vpack.c.bf16 %v552, %v551
  %v574 = vpack.c.bf16 %v554, %v553
  %v575 = vpack.c.bf16 %v556, %v555
  %v576 = vpack.c.bf16 %v558, %v557
  %v577 = vpack.c.bf16 %v560, %v559
  %v578 = vpack.c.bf16 %v562, %v561
  %580 = vset.pattern.permute.xlu0 0
  %581 = vperm.xlu0 %580, %v52
  %v582 = vpop.permute.xlu0 %581
  %585 = vset.pattern.permute.xlu0 0
  %586 = vperm.xlu0 %585, %v53
  %v587 = vpop.permute.xlu0 %586
  %590 = vset.pattern.permute.xlu0 0
  %591 = vperm.xlu0 %590, %v54
  %v592 = vpop.permute.xlu0 %591
  %595 = vset.pattern.permute.xlu0 0
  %596 = vperm.xlu0 %595, %v55
  %v597 = vpop.permute.xlu0 %596
  %600 = vset.pattern.permute.xlu0 0
  %601 = vperm.xlu0 %600, %v56
  %v602 = vpop.permute.xlu0 %601
  %605 = vset.pattern.permute.xlu0 0
  %606 = vperm.xlu0 %605, %v57
  %v607 = vpop.permute.xlu0 %606
  %610 = vset.pattern.permute.xlu0 0
  %611 = vperm.xlu0 %610, %v58
  %v612 = vpop.permute.xlu0 %611
  %615 = vset.pattern.permute.xlu0 0
  %616 = vperm.xlu0 %615, %v59
  %v617 = vpop.permute.xlu0 %616
  %v627 = vunpack.c.l.b16 %v563
  %v628 = vunpack.c.l.b16 %v564
  %v629 = vunpack.c.l.b16 %v565
  %v630 = vunpack.c.l.b16 %v566
  %v631 = vunpack.c.l.b16 %v567
  %v632 = vunpack.c.l.b16 %v568
  %v633 = vunpack.c.l.b16 %v569
  %v634 = vunpack.c.l.b16 %v570
  %v635 = vpack.c.b16 %v628, %v627
  %v636 = vpack.c.b16 %v630, %v629
  %v637 = vpack.c.b16 %v632, %v631
  %v638 = vpack.c.b16 %v634, %v633
  %643 = vmatprep.subr.bf16.mxu0 0
  %644 = vmatpush1.bf16.msra.mxu0 %v571
  %645 = vmatprep.subr.bf16.mxu0 0
  %646 = vmatpush1.bf16.msra.mxu0 %v572
  %647 = vmatprep.subr.bf16.mxu0 0
  %648 = vmatpush1.bf16.msra.mxu0 %v573
  %649 = vmatprep.subr.bf16.mxu0 0
  %650 = vmatpush1.bf16.msra.mxu0 %v574
  %651 = vmatprep.subr.bf16.mxu0 0
  %652 = vmatpush1.bf16.msra.mxu0 %v575
  %653 = vmatprep.subr.bf16.mxu0 0
  %654 = vmatpush1.bf16.msra.mxu0 %v576
  %655 = vmatprep.subr.bf16.mxu0 0
  %656 = vmatpush1.bf16.msra.mxu0 %v577
  %657 = vmatprep.subr.bf16.mxu0 0
  %658 = vmatpush1.bf16.msra.mxu0 %v578
  %659 = vmatprep.subr.bf16.mxu0 0
  %660 = vmatpush1.bf16.msra.mxu0 0
  %661 = vmatprep.subr.bf16.mxu0 0
  %662 = vmatpush1.bf16.msra.mxu0 0
  %663 = vmatprep.subr.bf16.mxu0 0
  %664 = vmatpush1.bf16.msra.mxu0 0
  %665 = vmatprep.subr.bf16.mxu0 0
  %666 = vmatpush1.bf16.msra.mxu0 0
  %667 = vmatprep.subr.bf16.mxu0 0
  %668 = vmatpush1.bf16.msra.mxu0 0
  %669 = vmatprep.subr.bf16.mxu0 0
  %670 = vmatpush1.bf16.msra.mxu0 0
  %671 = vmatprep.subr.bf16.mxu0 0
  %672 = vmatpush1.bf16.msra.mxu0 0
  %673 = vmatprep.subr.bf16.mxu0 0
  %674 = vmatpush1.bf16.msra.mxu0 0
  %675 = vmatprep.mubr.bf16.mxu0 0
  %676 = vmatmul.mubr.bf16.gmra.mrb[0].mxu0 %v635
  %v677 = vpop.f32.mrb[0].mxu0
  %v678 = vadd.f32 %v582, %v677
  %v679 = vpop.f32.mrb[0].mxu0
  %v680 = vpop.f32.mrb[0].mxu0
  %v681 = vadd.f32 %v587, %v680
  %v682 = vpop.f32.mrb[0].mxu0
  %683 = vmatprep.mubr.bf16.mxu0 0
  %684 = vmatmul.mubr.bf16.gmra.mrb[0].mxu0 %v636
  %v685 = vpop.f32.mrb[0].mxu0
  %v686 = vadd.f32 %v592, %v685
  %v687 = vpop.f32.mrb[0].mxu0
  %v688 = vpop.f32.mrb[0].mxu0
  %v689 = vadd.f32 %v597, %v688
  %v690 = vpop.f32.mrb[0].mxu0
  %691 = vmatprep.mubr.bf16.mxu0 0
  %692 = vmatmul.mubr.bf16.gmra.mrb[0].mxu0 %v637
  %v693 = vpop.f32.mrb[0].mxu0
  %v694 = vadd.f32 %v602, %v693
  %v695 = vpop.f32.mrb[0].mxu0
  %v696 = vpop.f32.mrb[0].mxu0
  %v697 = vadd.f32 %v607, %v696
  %v698 = vpop.f32.mrb[0].mxu0
  %699 = vmatprep.mubr.bf16.mxu0 0
  %700 = vmatmul.mubr.bf16.gmra.mrb[0].mxu0 %v638
  %v701 = vpop.f32.mrb[0].mxu0
  %v702 = vadd.f32 %v612, %v701
  %v703 = vpop.f32.mrb[0].mxu0
  %v704 = vpop.f32.mrb[0].mxu0
  %v705 = vadd.f32 %v617, %v704
  %v706 = vpop.f32.mrb[0].mxu0
  %707 = vdwg.mxu0
  %v708 = vmax.f32 %v678, 0.0
  %v709 = vmax.f32 %v681, 0.0
  %v710 = vmax.f32 %v686, 0.0
  %v711 = vmax.f32 %v689, 0.0
  %v712 = vmax.f32 %v694, 0.0
  %v713 = vmax.f32 %v697, 0.0
  %v714 = vmax.f32 %v702, 0.0
  %v715 = vmax.f32 %v705, 0.0
  %v716 = vld [vmem:[%s4] sm:$0xf]
  %v717 = vld [vmem:[%s4 + $0x4] sm:$0xf]
  %v718 = vld [vmem:[%s4 + $0x8] sm:$0xf]
  %v719 = vld [vmem:[%s4 + $0xc] sm:$0xf]
  %v720 = vpack.c.bf16 %v709, %v708
  %v721 = vpack.c.bf16 %v711, %v710
  %v722 = vpack.c.bf16 %v713, %v712
  %v723 = vpack.c.bf16 %v715, %v714
  %725 = vset.pattern.permute.xlu0 0
  %726 = vperm.xlu0 %725, %v60
  %v727 = vpop.permute.xlu0 %726
  %730 = vset.pattern.permute.xlu0 0
  %731 = vperm.xlu0 %730, %v61
  %v732 = vpop.permute.xlu0 %731
  %735 = vset.pattern.permute.xlu0 0
  %736 = vperm.xlu0 %735, %v62
  %v737 = vpop.permute.xlu0 %736
  %740 = vset.pattern.permute.xlu0 0
  %741 = vperm.xlu0 %740, %v63
  %v742 = vpop.permute.xlu0 %741
  %v748 = vunpack.c.l.b16 %v716
  %v749 = vunpack.c.l.b16 %v717
  %v750 = vunpack.c.l.b16 %v718
  %v751 = vunpack.c.l.b16 %v719
  %v752 = vpack.c.b16 %v749, %v748
  %v753 = vpack.c.b16 %v751, %v750
  %v755 = vsel %vm425, %v752, 0
  %v758 = vsel %vm425, %v753, 0
  %760 = vmatprep.subr.bf16.mxu0 0
  %761 = vmatpush1.bf16.msra.mxu0 %v720
  %762 = vmatprep.subr.bf16.mxu0 0
  %763 = vmatpush1.bf16.msra.mxu0 %v721
  %764 = vmatprep.subr.bf16.mxu0 0
  %765 = vmatpush1.bf16.msra.mxu0 %v722
  %766 = vmatprep.subr.bf16.mxu0 0
  %767 = vmatpush1.bf16.msra.mxu0 %v723
  %768 = vmatprep.subr.bf16.mxu0 0
  %769 = vmatpush1.bf16.msra.mxu0 0
  %770 = vmatprep.subr.bf16.mxu0 0
  %771 = vmatpush1.bf16.msra.mxu0 0
  %772 = vmatprep.subr.bf16.mxu0 0
  %773 = vmatpush1.bf16.msra.mxu0 0
  %774 = vmatprep.subr.bf16.mxu0 0
  %775 = vmatpush1.bf16.msra.mxu0 0
  %776 = vmatprep.subr.bf16.mxu0 0
  %777 = vmatpush1.bf16.msra.mxu0 0
  %778 = vmatprep.subr.bf16.mxu0 0
  %779 = vmatpush1.bf16.msra.mxu0 0
  %780 = vmatprep.subr.bf16.mxu0 0
  %781 = vmatpush1.bf16.msra.mxu0 0
  %782 = vmatprep.subr.bf16.mxu0 0
  %783 = vmatpush1.bf16.msra.mxu0 0
  %784 = vmatprep.subr.bf16.mxu0 0
  %785 = vmatpush1.bf16.msra.mxu0 0
  %786 = vmatprep.subr.bf16.mxu0 0
  %787 = vmatpush1.bf16.msra.mxu0 0
  %788 = vmatprep.subr.bf16.mxu0 0
  %789 = vmatpush1.bf16.msra.mxu0 0
  %790 = vmatprep.subr.bf16.mxu0 0
  %791 = vmatpush1.bf16.msra.mxu0 0
  %792 = vmatprep.mubr.bf16.mxu0 0
  %793 = vmatmul.mubr.bf16.gmra.mrb[0].mxu0 %v755
  %v794 = vpop.f32.mrb[0].mxu0
  %v795 = vadd.f32 %v727, %v794
  %v796 = vpop.f32.mrb[0].mxu0
  %v797 = vpop.f32.mrb[0].mxu0
  %v798 = vadd.f32 %v732, %v797
  %v799 = vpop.f32.mrb[0].mxu0
  %800 = vmatprep.mubr.bf16.mxu0 0
  %801 = vmatmul.mubr.bf16.gmra.mrb[0].mxu0 %v758
  %v802 = vpop.f32.mrb[0].mxu0
  %v803 = vadd.f32 %v737, %v802
  %v804 = vpop.f32.mrb[0].mxu0
  %v805 = vpop.f32.mrb[0].mxu0
  %v806 = vadd.f32 %v742, %v805
  %v807 = vpop.f32.mrb[0].mxu0
  %808 = vdwg.mxu0
  %v809 = vmax.f32 %v795, 0.0
  %v810 = vmax.f32 %v798, 0.0
  %v811 = vmax.f32 %v803, 0.0
  %v812 = vmax.f32 %v806, 0.0
  %v813 = vld [vmem:[%s5] sm:$0xff]
  %v814 = vld [vmem:[%s5 + $0x8] sm:$0xff]
  %v815 = vld [vmem:[%s5 + $0x10] sm:$0xff]
  %v816 = vld [vmem:[%s5 + $0x18] sm:$0xff]
  %818 = vset.pattern.permute.xlu0 0
  %819 = vperm.xlu0 %818, %v813
  %v820 = vpop.permute.xlu0 %819
  %823 = vset.pattern.permute.xlu0 0
  %824 = vperm.xlu0 %823, %v814
  %v825 = vpop.permute.xlu0 %824
  %828 = vset.pattern.permute.xlu0 0
  %829 = vperm.xlu0 %828, %v815
  %v830 = vpop.permute.xlu0 %829
  %833 = vset.pattern.permute.xlu0 0
  %834 = vperm.xlu0 %833, %v816
  %v835 = vpop.permute.xlu0 %834
  %v837 = vmul.f32 %v820, %v809
  %v838 = vmul.f32 %v825, %v810
  %v839 = vmul.f32 %v830, %v811
  %v840 = vmul.f32 %v835, %v812
  %v841 = vadd.f32 %v837, %v838
  %v842 = vadd.f32 %v841, %v839
  %v843 = vadd.f32 %v842, %v840
  %v844 = vrot.slane %v843, 4
  %v845 = vadd.f32 %v843, %v844
  %v846 = vrot.slane %v845, 2
  %v847 = vadd.f32 %v845, %v846
  %v848 = vrot.slane %v847, 1
  %v849 = vadd.f32 %v847, %v848
  %851 = vset.pattern.permute.xlu0 0
  %852 = vperm.xlu0 %851, %v64
  %v853 = vpop.permute.xlu0 %852
  %v855 = vadd.f32 %v849, %v853
  %v856 = vsub.f32 0.0, %v855
  %v857 = vmul.f32 %v856, 1.442695
  %v858 = vpow.pop %v857
  %v859 = vadd.f32 %v858, 1.0
  %v860 = vrcp.pop %v859
  %861 = vst [vmem:[%s7] sm:$0x1] %v860
  // Predicated region
  $region30: #{simple_classifier_forward.1} parent=0 // pred_check
    _
  $region31: #{simple_classifier_forward.1} parent=0 // pred_check_branch
    %863 = sbr.rel (0) target = $region33
  $region32: #{simple_classifier_forward.1} parent=0 // pred_region
    _
  $region33: #{simple_classifier_forward.1} parent=0 // pred_fallthru
    _
  // Predicated region
  $region34: #{simple_classifier_forward.1} parent=0 // pred_check
    _
  $region35: #{simple_classifier_forward.1} parent=0 // pred_check_branch
    %865 = sbr.rel (0) target = $region37
  $region36: #{simple_classifier_forward.1} parent=0 // pred_region
    _
  $region37: #{simple_classifier_forward.1} parent=0 // pred_fallthru
    _

</llo_original>
